<compile_context>
chip_gen: v6e
topology: v6e:2x2x1
jax: 0.10.0
libtpu: 0.0.40
codegen_flags: <defaults>
</compile_context>

<pallas_src>
import functools

import jax
import jax.numpy as jnp
from jax.experimental import pallas as pl
from jax.experimental.pallas import tpu as pltpu


def _round_up(n, m):
    return ((n + m - 1) // m) * m


def _gated_attn_kernel(x_ref, wab_ref, bab_ref, wct_ref, bc_ref, out_ref, *,
                       mxu_dtype):
    dp = wct_ref.shape[1]           # lane-aligned hidden dim
    C = out_ref.shape[1]

    # Cast in-kernel: the f32 tile is DMA'd once from HBM, cast on the VPU.
    x = x_ref[...].astype(mxu_dtype)                               # (tm, L)
    # Fused projection: one (tm, L) @ (L, 2*dp) matmul, f32 accumulation.
    z = jnp.dot(x, wab_ref[...], preferred_element_type=jnp.float32)
    z = z + bab_ref[...].astype(jnp.float32)                       # (tm, 2*dp)

    a = jnp.tanh(z[:, :dp])                                        # Tanh gate
    # sigmoid(t) = 0.5*tanh(0.5*t) + 0.5; the 0.5 pre-scale was folded into
    # Wb / bb at parameter-prep time, so only one EUP op + one FMA remain.
    b = 0.5 * jnp.tanh(z[:, dp:]) + 0.5                            # Sigmoid gate
    gated = a * b                                                  # (tm, dp) f32

    wct = wct_ref[...].astype(jnp.float32)                         # (C, dp)
    bc = bc_ref[...].astype(jnp.float32)                           # (1, C)
    if C == 1:
        # Tiny head: VPU multiply + cross-lane (XLU) reduce; keeps the MXU free.
        out = jnp.sum(gated * wct, axis=-1, keepdims=True) + bc    # (tm, 1)
    else:
        out = jax.lax.dot_general(
            gated, wct, (((1,), (1,)), ((), ())),
            preferred_element_type=jnp.float32) + bc               # (tm, C)
    out_ref[...] = out.astype(out_ref.dtype)


def prepare_gated_attention_params(wa, ba, wb, bb, wc, bc,
                                   mxu_dtype=jnp.bfloat16):
    """One-time parameter prep (hoisted out of the per-forward path).

    Fuses Wa|Wb into a single (L, 2*Dp) MXU operand, lane-aligns D to 128
    (zero padding -> exact result since the padded Wc rows are zero), folds the
    sigmoid pre-scale into the Wb half, transposes Wc and fixes dtypes.
    """
    L, D = wa.shape
    dp = _round_up(D, 128)
    mdt = wa.dtype if mxu_dtype is None else mxu_dtype
    if dp != D:
        colpad = ((0, 0), (0, dp - D))
        wa = jnp.pad(wa, colpad)
        wb = jnp.pad(wb, colpad)
        ba = jnp.pad(ba, colpad)
        bb = jnp.pad(bb, colpad)
        wc = jnp.pad(wc, ((0, dp - D), (0, 0)))   # zero rows kill padded gates
    wab = jnp.concatenate([wa, 0.5 * wb], axis=1).astype(mdt)       # (L, 2*dp)
    bab = jnp.concatenate([ba, 0.5 * bb], axis=1).astype(jnp.float32)
    wct = jnp.transpose(wc).astype(jnp.float32)                     # (C, dp)
    bcf = bc.astype(jnp.float32)                                    # (1, C)
    return wab, bab, wct, bcf


@functools.partial(jax.jit, static_argnames=("tm", "mxu_dtype"))
def gated_attention_forward(x, wab, bab, wct, bcf, *, tm=512,
                            mxu_dtype=jnp.bfloat16):
    """Pallas implementation of GatedAttentionNetwork.forward.

    Args:
      x: (N, L) float32 instance features (bag of N instances).
      wab, bab, wct, bcf: outputs of prepare_gated_attention_params.
      tm: max rows of x per grid step (512 ~ HBM-roofline sweet spot on v6e/v7x;
          for tm >= 1024 with L=1024 on v5e, raise vmem_limit_bytes).
      mxu_dtype: MXU operand dtype for x (cast in-kernel); None keeps x.dtype.
    Returns:
      (A, x) with A of shape (N, C), matching the PyTorch module.
    """
    N, L = x.shape
    two_dp = wab.shape[1]
    C, dp = wct.shape
    mdt = x.dtype if mxu_dtype is None else mxu_dtype

    # Balanced ragged-N tiling: split N as evenly as possible into tiles that
    # are multiples of 16 rows (bf16 sublane packing). The last block may
    # overhang N; Pallas masks the out-of-bounds reads/writes, so no wrapper
    # padding pass over x is needed.
    n_steps = pl.cdiv(N, tm)
    tm_eff = min(_round_up(tm, 16), _round_up(pl.cdiv(N, n_steps), 16))
    n_steps = pl.cdiv(N, tm_eff)

    kernel = functools.partial(_gated_attn_kernel, mxu_dtype=mdt)
    resident = lambda i: (0, 0)   # weights / biases: same block every grid step

    A = pl.pallas_call(
        kernel,
        out_shape=jax.ShapeDtypeStruct((N, C), x.dtype),
        grid_spec=pltpu.PrefetchScalarGridSpec(
            num_scalar_prefetch=0,
            grid=(n_steps,),
            in_specs=[
                pl.BlockSpec((tm_eff, L), lambda i: (i, 0)),   # x tile (f32)
                pl.BlockSpec((L, two_dp), resident),           # Wa | 0.5*Wb fused
                pl.BlockSpec((1, two_dp), resident),           # ba | 0.5*bb fused
                pl.BlockSpec((C, dp), resident),               # Wc^T
                pl.BlockSpec((1, C), resident),                # bc
            ],
            out_specs=pl.BlockSpec((tm_eff, C), lambda i: (i, 0)),
        ),
        compiler_params=pltpu.CompilerParams(
            # Row grid is embarrassingly parallel -> shards across the two
            # v7x TensorCores when n_steps >= 2.
            dimension_semantics=("parallel",),
        ),
    )(x, wab, bab, wct, bcf)

    return A, x


def _init_linear(key, fan_in, fan_out):
    """Deterministic PyTorch-style Linear init; W as (in, out), bias (1, out)."""
    kw, kb = jax.random.split(key)
    bound = 1.0 / jnp.sqrt(fan_in)
    w = jax.random.uniform(kw, (fan_in, fan_out), jnp.float32, -bound, bound)
    b = jax.random.uniform(kb, (1, fan_out), jnp.float32, -bound, bound)
    return w, b


def _reference(x, wa, ba, wb, bb, wc, bc):
    a = jnp.tanh(x @ wa + ba)
    b = jax.nn.sigmoid(x @ wb + bb)
    return (a * b) @ wc + bc


if __name__ == "__main__":
    # TODO(synk): the optional nn.Dropout(0.25) branch (dropout=True) is not
    # implemented; the module default (dropout=False) inference path is covered.
    key = jax.random.PRNGKey(0)

    # Case 1: module-like shapes scaled down (L=256, D=128, n_classes=1),
    # ragged bag of N=300 instances -> single balanced 304-row tile.
    N, L, D, C = 300, 256, 128, 1
    k_x, k_a, k_b, k_c = jax.random.split(key, 4)
    x = jax.random.normal(k_x, (N, L), jnp.float32)
    wa, ba = _init_linear(k_a, L, D)
    wb, bb = _init_linear(k_b, L, D)
    wc, bc = _init_linear(k_c, D, C)
    A_ref = _reference(x, wa, ba, wb, bb, wc, bc)

    params = prepare_gated_attention_params(wa, ba, wb, bb, wc, bc)
    A, x_out = gated_attention_forward(x, *params)
    jax.block_until_ready((A, x_out))
    assert A.shape == (N, C) and x_out.shape == (N, L)
    assert jnp.allclose(A, A_ref, atol=2e-2, rtol=2e-2)   # bf16 MXU operands
    assert jnp.array_equal(x_out, x)

    # Full-f32 path (strict parity, no bf16 cast anywhere).
    params32 = prepare_gated_attention_params(wa, ba, wb, bb, wc, bc,
                                              mxu_dtype=None)
    A32, _ = gated_attention_forward(x, *params32, mxu_dtype=None)
    jax.block_until_ready(A32)
    assert jnp.allclose(A32, A_ref, atol=1e-4, rtol=1e-4)

    # Case 2: non-lane-aligned D (200 -> padded to 256), multi-class head,
    # small tile to force a multi-step grid (3 x 112 rows) with overhang.
    D2, C2 = 200, 3
    k2a, k2b, k2c = jax.random.split(jax.random.PRNGKey(1), 3)
    wa2, ba2 = _init_linear(k2a, L, D2)
    wb2, bb2 = _init_linear(k2b, L, D2)
    wc2, bc2 = _init_linear(k2c, D2, C2)
    A2_ref = _reference(x, wa2, ba2, wb2, bb2, wc2, bc2)
    params2 = prepare_gated_attention_params(wa2, ba2, wb2, bb2, wc2, bc2)
    A2, _ = gated_attention_forward(x, *params2, tm=128)
    jax.block_until_ready(A2)
    assert A2.shape == (N, C2)
    assert jnp.allclose(A2, A2_ref, atol=2e-2, rtol=2e-2)

    print("KERNEL_OK")
</pallas_src>

<mosaic_0001>
module attributes {stable_mosaic.version = 11 : i64} {
  func.func @_gated_attn_kernel(%arg0: i32, %arg1: memref<304x256xf32, #tpu.memory_space<vmem>>, %arg2: memref<256x256xbf16, #tpu.memory_space<vmem>>, %arg3: memref<1x256xf32, #tpu.memory_space<vmem>>, %arg4: memref<1x128xf32, #tpu.memory_space<vmem>>, %arg5: memref<1x1xf32, #tpu.memory_space<vmem>>, %arg6: memref<304x1xf32, #tpu.memory_space<vmem>>) attributes {dimension_semantics = [#tpu.dimension_semantics<parallel>], iteration_bounds = array<i64: 1>, scalar_prefetch = 0 : i64, scratch_operands = 0 : i64, tpu.core_type = #tpu.core_type<tc>, window_params = [{transform_indices = @transform_0, window_bounds = array<i64: 304, 256>}, {pipeline_mode = #tpu.pipeline_mode<synchronous>, transform_indices = @transform_1, window_bounds = array<i64: 256, 256>}, {pipeline_mode = #tpu.pipeline_mode<synchronous>, transform_indices = @transform_2, window_bounds = array<i64: 1, 256>}, {pipeline_mode = #tpu.pipeline_mode<synchronous>, transform_indices = @transform_3, window_bounds = array<i64: 1, 128>}, {pipeline_mode = #tpu.pipeline_mode<synchronous>, transform_indices = @transform_4, window_bounds = array<i64: 1, 1>}, {transform_indices = @transform_5, window_bounds = array<i64: 304, 1>}]} {
    %c0 = arith.constant 0 : index
    %c0_0 = arith.constant 0 : index
    %0 = vector.load %arg1[%c0, %c0_0] : memref<304x256xf32, #tpu.memory_space<vmem>>, vector<304x256xf32>
    %1 = arith.truncf %0 : vector<304x256xf32> to vector<304x256xbf16>
    %c0_1 = arith.constant 0 : index
    %c0_2 = arith.constant 0 : index
    %2 = vector.load %arg2[%c0_1, %c0_2] : memref<256x256xbf16, #tpu.memory_space<vmem>>, vector<256x256xbf16>
    %cst = arith.constant dense<0.000000e+00> : vector<304x256xf32>
    %3 = tpu.matmul %1, %2, %cst {dimension_numbers = #tpu.dot_dimension_numbers<[1], [0], [0], [1], [0, 0, 1, 1], [], []>} : vector<304x256xbf16>, vector<256x256xbf16>, vector<304x256xf32> -> vector<304x256xf32>
    %c0_3 = arith.constant 0 : index
    %c0_4 = arith.constant 0 : index
    %4 = vector.load %arg3[%c0_3, %c0_4] : memref<1x256xf32, #tpu.memory_space<vmem>>, vector<1x256xf32>
    %5 = vector.broadcast %4 : vector<1x256xf32> to vector<304x256xf32>
    %6 = arith.addf %3, %5 : vector<304x256xf32>
    %7 = vector.extract_strided_slice %6 {offsets = [0, 0], sizes = [304, 128], strides = [1, 1]} : vector<304x256xf32> to vector<304x128xf32>
    %8 = math.tanh %7 : vector<304x128xf32>
    %9 = vector.extract_strided_slice %6 {offsets = [0, 128], sizes = [304, 128], strides = [1, 1]} : vector<304x256xf32> to vector<304x128xf32>
    %10 = math.tanh %9 : vector<304x128xf32>
    %cst_5 = arith.constant 5.000000e-01 : f32
    %11 = vector.broadcast %cst_5 : f32 to vector<304x128xf32>
    %12 = arith.mulf %11, %10 : vector<304x128xf32>
    %cst_6 = arith.constant 5.000000e-01 : f32
    %13 = vector.broadcast %cst_6 : f32 to vector<304x128xf32>
    %14 = arith.addf %12, %13 : vector<304x128xf32>
    %15 = arith.mulf %8, %14 : vector<304x128xf32>
    %c0_7 = arith.constant 0 : index
    %c0_8 = arith.constant 0 : index
    %16 = vector.load %arg4[%c0_7, %c0_8] : memref<1x128xf32, #tpu.memory_space<vmem>>, vector<1x128xf32>
    %c0_9 = arith.constant 0 : index
    %c0_10 = arith.constant 0 : index
    %17 = vector.load %arg5[%c0_9, %c0_10] : memref<1x1xf32, #tpu.memory_space<vmem>>, vector<1x1xf32>
    %18 = vector.broadcast %16 : vector<1x128xf32> to vector<304x128xf32>
    %19 = arith.mulf %15, %18 : vector<304x128xf32>
    %cst_11 = arith.constant dense<0.000000e+00> : vector<304xf32>
    %20 = vector.multi_reduction <add>, %19, %cst_11 [1] : vector<304x128xf32> to vector<304xf32>
    %21 = vector.shape_cast %20 : vector<304xf32> to vector<304x1xf32>
    %22 = vector.broadcast %17 : vector<1x1xf32> to vector<304x1xf32>
    %23 = arith.addf %21, %22 : vector<304x1xf32>
    %c0_12 = arith.constant 0 : index
    %c0_13 = arith.constant 0 : index
    %24 = vector.load %arg6[%c0_12, %c0_13] : memref<304x1xf32, #tpu.memory_space<vmem>>, vector<304x1xf32>
    tpu.vector_store %arg6[%c0_12, %c0_13], %23 {strides = array<i32>} : memref<304x1xf32, #tpu.memory_space<vmem>>, vector<304x1xf32>,
    return
  }
  func.func @transform_0(%arg0: i32) -> (i32, i32) {
    %c0_i32 = arith.constant 0 : i32
    %c0_i32_0 = arith.constant 0 : i32
    return %arg0, %c0_i32 : i32, i32
  }
  func.func @transform_1(%arg0: i32) -> (i32, i32) {
    %c0_i32 = arith.constant 0 : i32
    %c0_i32_0 = arith.constant 0 : i32
    %c0_i32_1 = arith.constant 0 : i32
    return %c0_i32, %c0_i32_0 : i32, i32
  }
  func.func @transform_2(%arg0: i32) -> (i32, i32) {
    %c0_i32 = arith.constant 0 : i32
    %c0_i32_0 = arith.constant 0 : i32
    %c0_i32_1 = arith.constant 0 : i32
    return %c0_i32, %c0_i32_0 : i32, i32
  }
  func.func @transform_3(%arg0: i32) -> (i32, i32) {
    %c0_i32 = arith.constant 0 : i32
    %c0_i32_0 = arith.constant 0 : i32
    %c0_i32_1 = arith.constant 0 : i32
    return %c0_i32, %c0_i32_0 : i32, i32
  }
  func.func @transform_4(%arg0: i32) -> (i32, i32) {
    %c0_i32 = arith.constant 0 : i32
    %c0_i32_0 = arith.constant 0 : i32
    %c0_i32_1 = arith.constant 0 : i32
    return %c0_i32, %c0_i32_0 : i32, i32
  }
  func.func @transform_5(%arg0: i32) -> (i32, i32) {
    %c0_i32 = arith.constant 0 : i32
    %c0_i32_0 = arith.constant 0 : i32
    return %arg0, %c0_i32 : i32, i32
  }
}

</mosaic_0001>

<llo_original>
// kernel: gated_attention_forward.1
$region0: #{gated_attention_forward.1}
  #allocation0 [shape = 'u32[]', space=smem, size = 0x4, offset = 0x4, fixed_abs, tag = 'smem constant byte address 0x4 - core index']
  #allocation1 [shape = 'u32[144,128]{1,0:T(1,128)}', space=vmem, size = 0x12000, scoped, tag = 'internal scratch']
  #allocation2 [shape = 'f32[1,1]{1,0:T(1,128)S(1)}', space=vmem, size = 0x200, scoped, tag = 'scoped memory for gated_attention_forward.1']
  %s0 = inlined_call_operand.hbm [shape: f32[300,256], index: 0, kind: input, shape index: {}]
  %s1 = inlined_call_operand.hbm [shape: bf16[256,256], index: 1, kind: input, shape index: {}]
  %s2 = inlined_call_operand.vmem [shape: f32[1,256], index: 2, kind: input, shape index: {}]
  %s3 = inlined_call_operand.vmem [shape: f32[1,128], index: 3, kind: input, shape index: {}]
  %s4 = inlined_call_operand.<no memory space> [shape: f32[1,1], index: 4, kind: input, shape index: {}]
  %s5 = inlined_call_operand.vmem [shape: f32[300,1], index: 5, kind: output, shape index: {}]
  %s6 = sld [smem:[#allocation0]]
  $region38: #{gated_attention_forward.1} parent=0
    _
  %s8 = ssub.s32 1, %s6
  %s9 = scalar_select 0, %s8, %s6
  %v10 = vstv %s4
  %11 = vst [vmem:[#allocation2] sm:$0x1] %v10
  $region1: #{gated_attention_forward.1} parent=0
    #allocation3 [shape = 'u8[311296]{0}', space=vmem, size = 0x4c000, scoped, tag = 'input window, operand 0, single buffered']
    #allocation4 [shape = 's32[1]{0}', space=sflag, size = 0x4, scoped, tag = 'scoped memory for gated_attention_forward.1']
    #allocation5 [shape = 'u8[131072]{0}', space=vmem, size = 0x20000, scoped, tag = 'input window, operand 1, single buffered']
    #allocation6 [shape = 's32[1]{0}', space=sflag, size = 0x4, scoped, tag = 'scoped memory for gated_attention_forward.1']
    %12 = vsyncpa [#allocation4], 0
    %13 = vsyncpa [#allocation6], 0
    // Predicated region
    $region2: #{gated_attention_forward.1} parent=1 // pred_check
      _
    $region3: #{gated_attention_forward.1} parent=1 // pred_check_branch
      %15 = sbr.rel (0) target = $region5
    $region4: #{gated_attention_forward.1} parent=1 // pred_region
      %s17 = ssub.s32 9728, 9728
      %18 = vsyncadd [#allocation4], %s17
      %s19 = sshll.u32 [#allocation3], 4
      %s20 = int_to_ptr.vmem [resolvable:$true] %s19
      %25 = dma.hbm_to_vmem [thread:$0]  %s0, 9728, %s20, [#allocation4], 256, 256, 16
    $region5: #{gated_attention_forward.1} parent=1 // pred_fallthru
      _
    // Predicated region
    $region6: #{gated_attention_forward.1} parent=1 // pred_check
      _
    $region7: #{gated_attention_forward.1} parent=1 // pred_check_branch
      %27 = sbr.rel (0) target = $region9
    $region8: #{gated_attention_forward.1} parent=1 // pred_region
      %s29 = ssub.s32 4096, 4096
      %30 = vsyncadd [#allocation6], %s29
      %s31 = sshll.u32 [#allocation5], 4
      %s32 = int_to_ptr.vmem [resolvable:$true] %s31
      %37 = dma.hbm_to_vmem [thread:$0]  %s1, 4096, %s32, [#allocation6], 128, 128, 8
    $region9: #{gated_attention_forward.1} parent=1 // pred_fallthru
      _
    // Predicated region
    $region10: #{gated_attention_forward.1} parent=1 // pred_check
      _
    $region11: #{gated_attention_forward.1} parent=1 // pred_check_branch
      %39 = sbr.rel (0) target = $region13
    $region12: #{gated_attention_forward.1} parent=1 // pred_region
      _
    $region13: #{gated_attention_forward.1} parent=1 // pred_fallthru
      _
    // Predicated region
    $region14: #{gated_attention_forward.1} parent=1 // pred_check
      _
    $region15: #{gated_attention_forward.1} parent=1 // pred_check_branch
      %41 = sbr.rel (0) target = $region17
    $region16: #{gated_attention_forward.1} parent=1 // pred_region
      _
    $region17: #{gated_attention_forward.1} parent=1 // pred_fallthru
      _
    // Predicated region
    $region18: #{gated_attention_forward.1} parent=1 // pred_check
      _
    $region19: #{gated_attention_forward.1} parent=1 // pred_check_branch
      %43 = sbr.rel (0) target = $region21
    $region20: #{gated_attention_forward.1} parent=1 // pred_region
      _
    $region21: #{gated_attention_forward.1} parent=1 // pred_fallthru
      _
    // Predicated region
    $region22: #{gated_attention_forward.1} parent=1 // pred_check
      _
    $region23: #{gated_attention_forward.1} parent=1 // pred_check_branch
      %45 = sbr.rel (0) target = $region25
    $region24: #{gated_attention_forward.1} parent=1 // pred_region
      %46 = dma.done [#allocation4], 9728
    $region25: #{gated_attention_forward.1} parent=1 // pred_fallthru
      _
    // Predicated region
    $region26: #{gated_attention_forward.1} parent=1 // pred_check
      _
    $region27: #{gated_attention_forward.1} parent=1 // pred_check_branch
      %48 = sbr.rel (0) target = $region29
    $region28: #{gated_attention_forward.1} parent=1 // pred_region
      %49 = dma.done [#allocation6], 4096
    $region29: #{gated_attention_forward.1} parent=1 // pred_fallthru
      _
    %v50 = vld [vmem:[#allocation3] sm:$0xff]
    %v51 = vld [vmem:[#allocation3 + $0x8] sm:$0xff]
    %v52 = vld [vmem:[#allocation3 + $0x10] sm:$0xff]
    %v53 = vld [vmem:[#allocation3 + $0x18] sm:$0xff]
    %v54 = vld [vmem:[#allocation3 + $0x20] sm:$0xff]
    %v55 = vld [vmem:[#allocation3 + $0x28] sm:$0xff]
    %v56 = vld [vmem:[#allocation3 + $0x30] sm:$0xff]
    %v57 = vld [vmem:[#allocation3 + $0x38] sm:$0xff]
    %v58 = vld [vmem:[#allocation3 + $0x40] sm:$0xff]
    %v59 = vld [vmem:[#allocation3 + $0x48] sm:$0xff]
    %v60 = vld [vmem:[#allocation3 + $0x50] sm:$0xff]
    %v61 = vld [vmem:[#allocation3 + $0x58] sm:$0xff]
    %v62 = vld [vmem:[#allocation3 + $0x60] sm:$0xff]
    %v63 = vld [vmem:[#allocation3 + $0x68] sm:$0xff]
    %v64 = vld [vmem:[#allocation3 + $0x70] sm:$0xff]
    %v65 = vld [vmem:[#allocation3 + $0x78] sm:$0xff]
    %v66 = vld [vmem:[#allocation3 + $0x80] sm:$0xff]
    %v67 = vld [vmem:[#allocation3 + $0x88] sm:$0xff]
    %v68 = vld [vmem:[#allocation3 + $0x90] sm:$0xff]
    %v69 = vld [vmem:[#allocation3 + $0x98] sm:$0xff]
    %v70 = vld [vmem:[#allocation3 + $0xa0] sm:$0xff]
    %v71 = vld [vmem:[#allocation3 + $0xa8] sm:$0xff]
    %v72 = vld [vmem:[#allocation3 + $0xb0] sm:$0xff]
    %v73 = vld [vmem:[#allocation3 + $0xb8] sm:$0xff]
    %v74 = vld [vmem:[#allocation3 + $0xc0] sm:$0xff]
    %v75 = vld [vmem:[#allocation3 + $0xc8] sm:$0xff]
    %v76 = vld [vmem:[#allocation3 + $0xd0] sm:$0xff]
    %v77 = vld [vmem:[#allocation3 + $0xd8] sm:$0xff]
    %v78 = vld [vmem:[#allocation3 + $0xe0] sm:$0xff]
    %v79 = vld [vmem:[#allocation3 + $0xe8] sm:$0xff]
    %v80 = vld [vmem:[#allocation3 + $0xf0] sm:$0xff]
    %v81 = vld [vmem:[#allocation3 + $0xf8] sm:$0xff]
    %v82 = vld [vmem:[#allocation3 + $0x100] sm:$0xff]
    %v83 = vld [vmem:[#allocation3 + $0x108] sm:$0xff]
    %v84 = vld [vmem:[#allocation3 + $0x110] sm:$0xff]
    %v85 = vld [vmem:[#allocation3 + $0x118] sm:$0xff]
    %v86 = vld [vmem:[#allocation3 + $0x120] sm:$0xff]
    %v87 = vld [vmem:[#allocation3 + $0x128] sm:$0xff]
    %v88 = vld [vmem:[#allocation3 + $0x130] sm:$0xff]
    %v89 = vld [vmem:[#allocation3 + $0x138] sm:$0xff]
    %v90 = vld [vmem:[#allocation3 + $0x140] sm:$0xff]
    %v91 = vld [vmem:[#allocation3 + $0x148] sm:$0xff]
    %v92 = vld [vmem:[#allocation3 + $0x150] sm:$0xff]
    %v93 = vld [vmem:[#allocation3 + $0x158] sm:$0xff]
    %v94 = vld [vmem:[#allocation3 + $0x160] sm:$0xff]
    %v95 = vld [vmem:[#allocation3 + $0x168] sm:$0xff]
    %v96 = vld [vmem:[#allocation3 + $0x170] sm:$0xff]
    %v97 = vld [vmem:[#allocation3 + $0x178] sm:$0xff]
    %v98 = vld [vmem:[#allocation3 + $0x180] sm:$0xff]
    %v99 = vld [vmem:[#allocation3 + $0x188] sm:$0xff]
    %v100 = vld [vmem:[#allocation3 + $0x190] sm:$0xff]
    %v101 = vld [vmem:[#allocation3 + $0x198] sm:$0xff]
    %v102 = vld [vmem:[#allocation3 + $0x1a0] sm:$0xff]
    %v103 = vld [vmem:[#allocation3 + $0x1a8] sm:$0xff]
    %v104 = vld [vmem:[#allocation3 + $0x1b0] sm:$0xff]
    %v105 = vld [vmem:[#allocation3 + $0x1b8] sm:$0xff]
    %v106 = vld [vmem:[#allocation3 + $0x1c0] sm:$0xff]
    %v107 = vld [vmem:[#allocation3 + $0x1c8] sm:$0xff]
    %v108 = vld [vmem:[#allocation3 + $0x1d0] sm:$0xff]
    %v109 = vld [vmem:[#allocation3 + $0x1d8] sm:$0xff]
    %v110 = vld [vmem:[#allocation3 + $0x1e0] sm:$0xff]
    %v111 = vld [vmem:[#allocation3 + $0x1e8] sm:$0xff]
    %v112 = vld [vmem:[#allocation3 + $0x1f0] sm:$0xff]
    %v113 = vld [vmem:[#allocation3 + $0x1f8] sm:$0xff]
    %v114 = vld [vmem:[#allocation3 + $0x200] sm:$0xff]
    %v115 = vld [vmem:[#allocation3 + $0x208] sm:$0xff]
    %v116 = vld [vmem:[#allocation3 + $0x210] sm:$0xff]
    %v117 = vld [vmem:[#allocation3 + $0x218] sm:$0xff]
    %v118 = vld [vmem:[#allocation3 + $0x220] sm:$0xff]
    %v119 = vld [vmem:[#allocation3 + $0x228] sm:$0xff]
    %v120 = vld [vmem:[#allocation3 + $0x230] sm:$0xff]
    %v121 = vld [vmem:[#allocation3 + $0x238] sm:$0xff]
    %v122 = vld [vmem:[#allocation3 + $0x240] sm:$0xff]
    %v123 = vld [vmem:[#allocation3 + $0x248] sm:$0xff]
    %v124 = vld [vmem:[#allocation3 + $0x250] sm:$0xff]
    %v125 = vld [vmem:[#allocation3 + $0x258] sm:$0xff]
    %v126 = vpack.c.bf16 %v52, %v50
    %v127 = vpack.c.bf16 %v53, %v51
    %v128 = vpack.c.bf16 %v56, %v54
    %v129 = vpack.c.bf16 %v57, %v55
    %v130 = vpack.c.bf16 %v60, %v58
    %v131 = vpack.c.bf16 %v61, %v59
    %v132 = vpack.c.bf16 %v64, %v62
    %v133 = vpack.c.bf16 %v65, %v63
    %v134 = vpack.c.bf16 %v68, %v66
    %v135 = vpack.c.bf16 %v69, %v67
    %v136 = vpack.c.bf16 %v72, %v70
    %v137 = vpack.c.bf16 %v73, %v71
    %v138 = vpack.c.bf16 %v76, %v74
    %v139 = vpack.c.bf16 %v77, %v75
    %v140 = vpack.c.bf16 %v80, %v78
    %v141 = vpack.c.bf16 %v81, %v79
    %v142 = vpack.c.bf16 %v84, %v82
    %v143 = vpack.c.bf16 %v85, %v83
    %v144 = vpack.c.bf16 %v88, %v86
    %v145 = vpack.c.bf16 %v89, %v87
    %v146 = vpack.c.bf16 %v92, %v90
    %v147 = vpack.c.bf16 %v93, %v91
    %v148 = vpack.c.bf16 %v96, %v94
    %v149 = vpack.c.bf16 %v97, %v95
    %v150 = vpack.c.bf16 %v100, %v98
    %v151 = vpack.c.bf16 %v101, %v99
    %v152 = vpack.c.bf16 %v104, %v102
    %v153 = vpack.c.bf16 %v105, %v103
    %v154 = vpack.c.bf16 %v108, %v106
    %v155 = vpack.c.bf16 %v109, %v107
    %v156 = vpack.c.bf16 %v112, %v110
    %v157 = vpack.c.bf16 %v113, %v111
    %v158 = vpack.c.bf16 %v116, %v114
    %v159 = vpack.c.bf16 %v117, %v115
    %v160 = vpack.c.bf16 %v120, %v118
    %v161 = vpack.c.bf16 %v121, %v119
    %v162 = vpack.c.bf16 %v124, %v122
    %v163 = vpack.c.bf16 %v125, %v123
    %v164 = vld [vmem:[#allocation5] sm:$0xff]
    %v165 = vld [vmem:[#allocation5 + $0x8] sm:$0xff]
    %v166 = vld [vmem:[#allocation5 + $0x10] sm:$0xff]
    %v167 = vld [vmem:[#allocation5 + $0x18] sm:$0xff]
    %v168 = vld [vmem:[#allocation5 + $0x20] sm:$0xff]
    %v169 = vld [vmem:[#allocation5 + $0x28] sm:$0xff]
    %v170 = vld [vmem:[#allocation5 + $0x30] sm:$0xff]
    %v171 = vld [vmem:[#allocation5 + $0x38] sm:$0xff]
    %v172 = vld [vmem:[#allocation5 + $0x40] sm:$0xff]
    %v173 = vld [vmem:[#allocation5 + $0x48] sm:$0xff]
    %v174 = vld [vmem:[#allocation5 + $0x50] sm:$0xff]
    %v175 = vld [vmem:[#allocation5 + $0x58] sm:$0xff]
    %v176 = vld [vmem:[#allocation5 + $0x60] sm:$0xff]
    %v177 = vld [vmem:[#allocation5 + $0x68] sm:$0xff]
    %v178 = vld [vmem:[#allocation5 + $0x70] sm:$0xff]
    %v179 = vld [vmem:[#allocation5 + $0x78] sm:$0xff]
    %v180 = vld [vmem:[#allocation5 + $0x80] sm:$0xff]
    %v181 = vld [vmem:[#allocation5 + $0x88] sm:$0xff]
    %v182 = vld [vmem:[#allocation5 + $0x90] sm:$0xff]
    %v183 = vld [vmem:[#allocation5 + $0x98] sm:$0xff]
    %v184 = vld [vmem:[#allocation5 + $0xa0] sm:$0xff]
    %v185 = vld [vmem:[#allocation5 + $0xa8] sm:$0xff]
    %v186 = vld [vmem:[#allocation5 + $0xb0] sm:$0xff]
    %v187 = vld [vmem:[#allocation5 + $0xb8] sm:$0xff]
    %v188 = vld [vmem:[#allocation5 + $0xc0] sm:$0xff]
    %v189 = vld [vmem:[#allocation5 + $0xc8] sm:$0xff]
    %v190 = vld [vmem:[#allocation5 + $0xd0] sm:$0xff]
    %v191 = vld [vmem:[#allocation5 + $0xd8] sm:$0xff]
    %v192 = vld [vmem:[#allocation5 + $0xe0] sm:$0xff]
    %v193 = vld [vmem:[#allocation5 + $0xe8] sm:$0xff]
    %v194 = vld [vmem:[#allocation5 + $0xf0] sm:$0xff]
    %v195 = vld [vmem:[#allocation5 + $0xf8] sm:$0xff]
    %v196 = vld [vmem:[%s2] sm:$0x3]
    %v198 = vlaneseq
    %v199 = vshrl.u32 %v198, 7
    %v200 = vsub.s32 0, %v199
    %v201 = vrot.slane %v196, %v200
    %v202 = vlaneseq
    %v203 = vshrl.u32 %v202, 7
    %v204 = vsub.s32 1, %v203
    %v205 = vrot.slane %v196, %v204
    %v240 = vunpack.c.l.b16 %v164
    %v241 = vunpack.c.h.b16 %v164
    %v242 = vunpack.c.l.b16 %v165
    %v243 = vunpack.c.h.b16 %v165
    %v244 = vunpack.c.l.b16 %v166
    %v245 = vunpack.c.h.b16 %v166
    %v246 = vunpack.c.l.b16 %v167
    %v247 = vunpack.c.h.b16 %v167
    %v248 = vunpack.c.l.b16 %v168
    %v249 = vunpack.c.h.b16 %v168
    %v250 = vunpack.c.l.b16 %v169
    %v251 = vunpack.c.h.b16 %v169
    %v252 = vunpack.c.l.b16 %v170
    %v253 = vunpack.c.h.b16 %v170
    %v254 = vunpack.c.l.b16 %v171
    %v255 = vunpack.c.h.b16 %v171
    %v256 = vunpack.c.l.b16 %v172
    %v257 = vunpack.c.h.b16 %v172
    %v258 = vunpack.c.l.b16 %v173
    %v259 = vunpack.c.h.b16 %v173
    %v260 = vunpack.c.l.b16 %v174
    %v261 = vunpack.c.h.b16 %v174
    %v262 = vunpack.c.l.b16 %v175
    %v263 = vunpack.c.h.b16 %v175
    %v264 = vunpack.c.l.b16 %v176
    %v265 = vunpack.c.h.b16 %v176
    %v266 = vunpack.c.l.b16 %v177
    %v267 = vunpack.c.h.b16 %v177
    %v268 = vunpack.c.l.b16 %v178
    %v269 = vunpack.c.h.b16 %v178
    %v270 = vunpack.c.l.b16 %v179
    %v271 = vunpack.c.h.b16 %v179
    %v272 = vunpack.c.l.b16 %v180
    %v273 = vunpack.c.h.b16 %v180
    %v274 = vunpack.c.l.b16 %v181
    %v275 = vunpack.c.h.b16 %v181
    %v276 = vunpack.c.l.b16 %v182
    %v277 = vunpack.c.h.b16 %v182
    %v278 = vunpack.c.l.b16 %v183
    %v279 = vunpack.c.h.b16 %v183
    %v280 = vunpack.c.l.b16 %v184
    %v281 = vunpack.c.h.b16 %v184
    %v282 = vunpack.c.l.b16 %v185
    %v283 = vunpack.c.h.b16 %v185
    %v284 = vunpack.c.l.b16 %v186
    %v285 = vunpack.c.h.b16 %v186
    %v286 = vunpack.c.l.b16 %v187
    %v287 = vunpack.c.h.b16 %v187
    %v288 = vunpack.c.l.b16 %v188
    %v289 = vunpack.c.h.b16 %v188
    %v290 = vunpack.c.l.b16 %v189
    %v291 = vunpack.c.h.b16 %v189
    %v292 = vunpack.c.l.b16 %v190
    %v293 = vunpack.c.h.b16 %v190
    %v294 = vunpack.c.l.b16 %v191
    %v295 = vunpack.c.h.b16 %v191
    %v296 = vunpack.c.l.b16 %v192
    %v297 = vunpack.c.h.b16 %v192
    %v298 = vunpack.c.l.b16 %v193
    %v299 = vunpack.c.h.b16 %v193
    %v300 = vunpack.c.l.b16 %v194
    %v301 = vunpack.c.h.b16 %v194
    %v302 = vunpack.c.l.b16 %v195
    %v303 = vunpack.c.h.b16 %v195
    %v304 = vpack.c.b16 %v242, %v240
    %v305 = vpack.c.b16 %v243, %v241
    %v306 = vpack.c.b16 %v246, %v244
    %v307 = vpack.c.b16 %v247, %v245
    %v308 = vpack.c.b16 %v250, %v248
    %v309 = vpack.c.b16 %v251, %v249
    %v310 = vpack.c.b16 %v254, %v252
    %v311 = vpack.c.b16 %v255, %v253
    %v312 = vpack.c.b16 %v258, %v256
    %v313 = vpack.c.b16 %v259, %v257
    %v314 = vpack.c.b16 %v262, %v260
    %v315 = vpack.c.b16 %v263, %v261
    %v316 = vpack.c.b16 %v266, %v264
    %v317 = vpack.c.b16 %v267, %v265
    %v318 = vpack.c.b16 %v270, %v268
    %v319 = vpack.c.b16 %v271, %v269
    %v320 = vpack.c.b16 %v274, %v272
    %v321 = vpack.c.b16 %v275, %v273
    %v322 = vpack.c.b16 %v278, %v276
    %v323 = vpack.c.b16 %v279, %v277
    %v324 = vpack.c.b16 %v282, %v280
    %v325 = vpack.c.b16 %v283, %v281
    %v326 = vpack.c.b16 %v286, %v284
    %v327 = vpack.c.b16 %v287, %v285
    %v328 = vpack.c.b16 %v290, %v288
    %v329 = vpack.c.b16 %v291, %v289
    %v330 = vpack.c.b16 %v294, %v292
    %v331 = vpack.c.b16 %v295, %v293
    %v332 = vpack.c.b16 %v298, %v296
    %v333 = vpack.c.b16 %v299, %v297
    %v334 = vpack.c.b16 %v302, %v300
    %v335 = vpack.c.b16 %v303, %v301
    %368 = vmatprep.subr.bf16.mxu0 %v319
    %369 = vmatpush1.bf16.msra.mxu0 %v318
    %370 = vmatprep.subr.bf16.mxu0 %v317
    %371 = vmatpush1.bf16.msra.mxu0 %v316
    %372 = vmatprep.subr.bf16.mxu0 %v315
    %373 = vmatpush1.bf16.msra.mxu0 %v314
    %374 = vmatprep.subr.bf16.mxu0 %v313
    %375 = vmatpush1.bf16.msra.mxu0 %v312
    %376 = vmatprep.subr.bf16.mxu0 %v311
    %377 = vmatpush1.bf16.msra.mxu0 %v310
    %378 = vmatprep.subr.bf16.mxu0 %v309
    %379 = vmatpush1.bf16.msra.mxu0 %v308
    %380 = vmatprep.subr.bf16.mxu0 %v307
    %381 = vmatpush1.bf16.msra.mxu0 %v306
    %382 = vmatprep.subr.bf16.mxu0 %v305
    %383 = vmatpush1.bf16.msra.mxu0 %v304
    %384 = vmatprep.subr.bf16.mxu0 %v335
    %385 = vmatpush2.bf16.msra.mxu0 %v334
    %386 = vmatprep.subr.bf16.mxu0 %v333
    %387 = vmatpush2.bf16.msra.mxu0 %v332
    %388 = vmatprep.subr.bf16.mxu0 %v331
    %389 = vmatpush2.bf16.msra.mxu0 %v330
    %390 = vmatprep.subr.bf16.mxu0 %v329
    %391 = vmatpush2.bf16.msra.mxu0 %v328
    %392 = vmatprep.subr.bf16.mxu0 %v327
    %393 = vmatpush2.bf16.msra.mxu0 %v326
    %394 = vmatprep.subr.bf16.mxu0 %v325
    %395 = vmatpush2.bf16.msra.mxu0 %v324
    %396 = vmatprep.subr.bf16.mxu0 %v323
    %397 = vmatpush2.bf16.msra.mxu0 %v322
    %398 = vmatprep.subr.bf16.mxu0 %v321
    %399 = vmatpush2.bf16.msra.mxu0 %v320
    %400 = vmatprep.mubr.bf16.mxu0 %v127
    %401 = vmatmul.mubr.bf16.gmra.mxu0 %v126
    %v402 = vpop.f32.mrf.mxu0
    %v403 = vadd.f32 %v201, %v402
    %v404 = vpop.f32.mrf.mxu0
    %v405 = vadd.f32 %v205, %v404
    %v406 = vpop.f32.mrf.mxu0
    %v407 = vadd.f32 %v201, %v406
    %v408 = vpop.f32.mrf.mxu0
    %v409 = vadd.f32 %v205, %v408
    %410 = vmatprep.mubr.bf16.mxu0 %v129
    %411 = vmatmul.mubr.bf16.gmra.mxu0 %v128
    %v412 = vpop.f32.mrf.mxu0
    %v413 = vadd.f32 %v201, %v412
    %v414 = vpop.f32.mrf.mxu0
    %v415 = vadd.f32 %v205, %v414
    %v416 = vpop.f32.mrf.mxu0
    %v417 = vadd.f32 %v201, %v416
    %v418 = vpop.f32.mrf.mxu0
    %v419 = vadd.f32 %v205, %v418
    %420 = vmatprep.mubr.bf16.mxu0 %v131
    %421 = vmatmul.mubr.bf16.gmra.mxu0 %v130
    %v422 = vpop.f32.mrf.mxu0
    %v423 = vadd.f32 %v201, %v422
    %v424 = vpop.f32.mrf.mxu0
    %v425 = vadd.f32 %v205, %v424
    %v426 = vpop.f32.mrf.mxu0
    %v427 = vadd.f32 %v201, %v426
    %v428 = vpop.f32.mrf.mxu0
    %v429 = vadd.f32 %v205, %v428
    %430 = vmatprep.mubr.bf16.mxu0 %v133
    %431 = vmatmul.mubr.bf16.gmra.mxu0 %v132
    %v432 = vpop.f32.mrf.mxu0
    %v433 = vadd.f32 %v201, %v432
    %v434 = vpop.f32.mrf.mxu0
    %v435 = vadd.f32 %v205, %v434
    %v436 = vpop.f32.mrf.mxu0
    %v437 = vadd.f32 %v201, %v436
    %v438 = vpop.f32.mrf.mxu0
    %v439 = vadd.f32 %v205, %v438
    %440 = vmatprep.mubr.bf16.mxu0 %v135
    %441 = vmatmul.mubr.bf16.gmra.mxu0 %v134
    %v442 = vpop.f32.mrf.mxu0
    %v443 = vadd.f32 %v201, %v442
    %v444 = vpop.f32.mrf.mxu0
    %v445 = vadd.f32 %v205, %v444
    %v446 = vpop.f32.mrf.mxu0
    %v447 = vadd.f32 %v201, %v446
    %v448 = vpop.f32.mrf.mxu0
    %v449 = vadd.f32 %v205, %v448
    %450 = vmatprep.mubr.bf16.mxu0 %v137
    %451 = vmatmul.mubr.bf16.gmra.mxu0 %v136
    %v452 = vpop.f32.mrf.mxu0
    %v453 = vadd.f32 %v201, %v452
    %v454 = vpop.f32.mrf.mxu0
    %v455 = vadd.f32 %v205, %v454
    %v456 = vpop.f32.mrf.mxu0
    %v457 = vadd.f32 %v201, %v456
    %v458 = vpop.f32.mrf.mxu0
    %v459 = vadd.f32 %v205, %v458
    %460 = vmatprep.mubr.bf16.mxu0 %v139
    %461 = vmatmul.mubr.bf16.gmra.mxu0 %v138
    %v462 = vpop.f32.mrf.mxu0
    %v463 = vadd.f32 %v201, %v462
    %v464 = vpop.f32.mrf.mxu0
    %v465 = vadd.f32 %v205, %v464
    %v466 = vpop.f32.mrf.mxu0
    %v467 = vadd.f32 %v201, %v466
    %v468 = vpop.f32.mrf.mxu0
    %v469 = vadd.f32 %v205, %v468
    %470 = vmatprep.mubr.bf16.mxu0 %v141
    %471 = vmatmul.mubr.bf16.gmra.mxu0 %v140
    %v472 = vpop.f32.mrf.mxu0
    %v473 = vadd.f32 %v201, %v472
    %v474 = vpop.f32.mrf.mxu0
    %v475 = vadd.f32 %v205, %v474
    %v476 = vpop.f32.mrf.mxu0
    %v477 = vadd.f32 %v201, %v476
    %v478 = vpop.f32.mrf.mxu0
    %v479 = vadd.f32 %v205, %v478
    %480 = vmatprep.mubr.bf16.mxu0 %v143
    %481 = vmatmul.mubr.bf16.gmra.mxu0 %v142
    %v482 = vpop.f32.mrf.mxu0
    %v483 = vadd.f32 %v201, %v482
    %v484 = vpop.f32.mrf.mxu0
    %v485 = vadd.f32 %v205, %v484
    %v486 = vpop.f32.mrf.mxu0
    %v487 = vadd.f32 %v201, %v486
    %v488 = vpop.f32.mrf.mxu0
    %v489 = vadd.f32 %v205, %v488
    %490 = vmatprep.mubr.bf16.mxu0 %v145
    %491 = vmatmul.mubr.bf16.gmra.mxu0 %v144
    %v492 = vpop.f32.mrf.mxu0
    %v493 = vadd.f32 %v201, %v492
    %v494 = vpop.f32.mrf.mxu0
    %v495 = vadd.f32 %v205, %v494
    %v496 = vpop.f32.mrf.mxu0
    %v497 = vadd.f32 %v201, %v496
    %v498 = vpop.f32.mrf.mxu0
    %v499 = vadd.f32 %v205, %v498
    %500 = vmatprep.mubr.bf16.mxu0 %v147
    %501 = vmatmul.mubr.bf16.gmra.mxu0 %v146
    %v502 = vpop.f32.mrf.mxu0
    %v503 = vadd.f32 %v201, %v502
    %v504 = vpop.f32.mrf.mxu0
    %v505 = vadd.f32 %v205, %v504
    %v506 = vpop.f32.mrf.mxu0
    %v507 = vadd.f32 %v201, %v506
    %v508 = vpop.f32.mrf.mxu0
    %v509 = vadd.f32 %v205, %v508
    %510 = vmatprep.mubr.bf16.mxu0 %v149
    %511 = vmatmul.mubr.bf16.gmra.mxu0 %v148
    %v512 = vpop.f32.mrf.mxu0
    %v513 = vadd.f32 %v201, %v512
    %v514 = vpop.f32.mrf.mxu0
    %v515 = vadd.f32 %v205, %v514
    %v516 = vpop.f32.mrf.mxu0
    %v517 = vadd.f32 %v201, %v516
    %v518 = vpop.f32.mrf.mxu0
    %v519 = vadd.f32 %v205, %v518
    %520 = vmatprep.mubr.bf16.mxu0 %v151
    %521 = vmatmul.mubr.bf16.gmra.mxu0 %v150
    %v522 = vpop.f32.mrf.mxu0
    %v523 = vadd.f32 %v201, %v522
    %v524 = vpop.f32.mrf.mxu0
    %v525 = vadd.f32 %v205, %v524
    %v526 = vpop.f32.mrf.mxu0
    %v527 = vadd.f32 %v201, %v526
    %v528 = vpop.f32.mrf.mxu0
    %v529 = vadd.f32 %v205, %v528
    %530 = vmatprep.mubr.bf16.mxu0 %v153
    %531 = vmatmul.mubr.bf16.gmra.mxu0 %v152
    %v532 = vpop.f32.mrf.mxu0
    %v533 = vadd.f32 %v201, %v532
    %v534 = vpop.f32.mrf.mxu0
    %v535 = vadd.f32 %v205, %v534
    %v536 = vpop.f32.mrf.mxu0
    %v537 = vadd.f32 %v201, %v536
    %v538 = vpop.f32.mrf.mxu0
    %v539 = vadd.f32 %v205, %v538
    %540 = vmatprep.mubr.bf16.mxu0 %v155
    %541 = vmatmul.mubr.bf16.gmra.mxu0 %v154
    %v542 = vpop.f32.mrf.mxu0
    %v543 = vadd.f32 %v201, %v542
    %v544 = vpop.f32.mrf.mxu0
    %v545 = vadd.f32 %v205, %v544
    %v546 = vpop.f32.mrf.mxu0
    %v547 = vadd.f32 %v201, %v546
    %v548 = vpop.f32.mrf.mxu0
    %v549 = vadd.f32 %v205, %v548
    %550 = vmatprep.mubr.bf16.mxu0 %v157
    %551 = vmatmul.mubr.bf16.gmra.mxu0 %v156
    %v552 = vpop.f32.mrf.mxu0
    %v553 = vadd.f32 %v201, %v552
    %v554 = vpop.f32.mrf.mxu0
    %v555 = vadd.f32 %v205, %v554
    %v556 = vpop.f32.mrf.mxu0
    %v557 = vadd.f32 %v201, %v556
    %v558 = vpop.f32.mrf.mxu0
    %v559 = vadd.f32 %v205, %v558
    %560 = vmatprep.mubr.bf16.mxu0 %v159
    %561 = vmatmul.mubr.bf16.gmra.mxu0 %v158
    %v562 = vpop.f32.mrf.mxu0
    %v563 = vadd.f32 %v201, %v562
    %v564 = vpop.f32.mrf.mxu0
    %v565 = vadd.f32 %v205, %v564
    %v566 = vpop.f32.mrf.mxu0
    %v567 = vadd.f32 %v201, %v566
    %v568 = vpop.f32.mrf.mxu0
    %v569 = vadd.f32 %v205, %v568
    %570 = vmatprep.mubr.bf16.mxu0 %v161
    %571 = vmatmul.mubr.bf16.gmra.mxu0 %v160
    %v572 = vpop.f32.mrf.mxu0
    %v573 = vadd.f32 %v201, %v572
    %v574 = vpop.f32.mrf.mxu0
    %v575 = vadd.f32 %v205, %v574
    %v576 = vpop.f32.mrf.mxu0
    %v577 = vadd.f32 %v201, %v576
    %v578 = vpop.f32.mrf.mxu0
    %v579 = vadd.f32 %v205, %v578
    %580 = vmatprep.mubr.bf16.mxu0 %v163
    %581 = vmatmul.mubr.bf16.gmra.mxu0 %v162
    %v582 = vpop.f32.mrf.mxu0
    %v583 = vadd.f32 %v201, %v582
    %v584 = vpop.f32.mrf.mxu0
    %v585 = vadd.f32 %v205, %v584
    %v586 = vpop.f32.mrf.mxu0
    %v587 = vadd.f32 %v201, %v586
    %v588 = vpop.f32.mrf.mxu0
    %v589 = vadd.f32 %v205, %v588
    %590 = vdwg.mxu0
    %v591 = vtanh.pop %v403
    %v592 = vtanh.pop %v407
    %v593 = vtanh.pop %v413
    %v594 = vtanh.pop %v417
    %v595 = vtanh.pop %v423
    %v596 = vtanh.pop %v427
    %v597 = vtanh.pop %v433
    %v598 = vtanh.pop %v437
    %v599 = vtanh.pop %v443
    %v600 = vtanh.pop %v447
    %v601 = vtanh.pop %v453
    %v602 = vtanh.pop %v457
    %v603 = vtanh.pop %v463
    %v604 = vtanh.pop %v467
    %v605 = vtanh.pop %v473
    %v606 = vtanh.pop %v477
    %v607 = vtanh.pop %v483
    %v608 = vtanh.pop %v487
    %v609 = vtanh.pop %v493
    %v610 = vtanh.pop %v497
    %v611 = vtanh.pop %v503
    %v612 = vtanh.pop %v507
    %v613 = vtanh.pop %v513
    %v614 = vtanh.pop %v517
    %v615 = vtanh.pop %v523
    %v616 = vtanh.pop %v527
    %v617 = vtanh.pop %v533
    %v618 = vtanh.pop %v537
    %v619 = vtanh.pop %v543
    %v620 = vtanh.pop %v547
    %v621 = vtanh.pop %v553
    %v622 = vtanh.pop %v557
    %v623 = vtanh.pop %v563
    %v624 = vtanh.pop %v567
    %v625 = vtanh.pop %v573
    %v626 = vtanh.pop %v577
    %v627 = vtanh.pop %v583
    %v628 = vtanh.pop %v587
    %v629 = vtanh.pop %v405
    %v630 = vtanh.pop %v409
    %v631 = vtanh.pop %v415
    %v632 = vtanh.pop %v419
    %v633 = vtanh.pop %v425
    %v634 = vtanh.pop %v429
    %v635 = vtanh.pop %v435
    %v636 = vtanh.pop %v439
    %v637 = vtanh.pop %v445
    %v638 = vtanh.pop %v449
    %v639 = vtanh.pop %v455
    %v640 = vtanh.pop %v459
    %v641 = vtanh.pop %v465
    %v642 = vtanh.pop %v469
    %v643 = vtanh.pop %v475
    %v644 = vtanh.pop %v479
    %v645 = vtanh.pop %v485
    %v646 = vtanh.pop %v489
    %v647 = vtanh.pop %v495
    %v648 = vtanh.pop %v499
    %v649 = vtanh.pop %v505
    %v650 = vtanh.pop %v509
    %v651 = vtanh.pop %v515
    %v652 = vtanh.pop %v519
    %v653 = vtanh.pop %v525
    %v654 = vtanh.pop %v529
    %v655 = vtanh.pop %v535
    %v656 = vtanh.pop %v539
    %v657 = vtanh.pop %v545
    %v658 = vtanh.pop %v549
    %v659 = vtanh.pop %v555
    %v660 = vtanh.pop %v559
    %v661 = vtanh.pop %v565
    %v662 = vtanh.pop %v569
    %v663 = vtanh.pop %v575
    %v664 = vtanh.pop %v579
    %v665 = vtanh.pop %v585
    %v666 = vtanh.pop %v589
    %v667 = vmul.f32 %v629, 0.5
    %v668 = vmul.f32 %v630, 0.5
    %v669 = vmul.f32 %v631, 0.5
    %v670 = vmul.f32 %v632, 0.5
    %v671 = vmul.f32 %v633, 0.5
    %v672 = vmul.f32 %v634, 0.5
    %v673 = vmul.f32 %v635, 0.5
    %v674 = vmul.f32 %v636, 0.5
    %v675 = vmul.f32 %v637, 0.5
    %v676 = vmul.f32 %v638, 0.5
    %v677 = vmul.f32 %v639, 0.5
    %v678 = vmul.f32 %v640, 0.5
    %v679 = vmul.f32 %v641, 0.5
    %v680 = vmul.f32 %v642, 0.5
    %v681 = vmul.f32 %v643, 0.5
    %v682 = vmul.f32 %v644, 0.5
    %v683 = vmul.f32 %v645, 0.5
    %v684 = vmul.f32 %v646, 0.5
    %v685 = vmul.f32 %v647, 0.5
    %v686 = vmul.f32 %v648, 0.5
    %v687 = vmul.f32 %v649, 0.5
    %v688 = vmul.f32 %v650, 0.5
    %v689 = vmul.f32 %v651, 0.5
    %v690 = vmul.f32 %v652, 0.5
    %v691 = vmul.f32 %v653, 0.5
    %v692 = vmul.f32 %v654, 0.5
    %v693 = vmul.f32 %v655, 0.5
    %v694 = vmul.f32 %v656, 0.5
    %v695 = vmul.f32 %v657, 0.5
    %v696 = vmul.f32 %v658, 0.5
    %v697 = vmul.f32 %v659, 0.5
    %v698 = vmul.f32 %v660, 0.5
    %v699 = vmul.f32 %v661, 0.5
    %v700 = vmul.f32 %v662, 0.5
    %v701 = vmul.f32 %v663, 0.5
    %v702 = vmul.f32 %v664, 0.5
    %v703 = vmul.f32 %v665, 0.5
    %v704 = vmul.f32 %v666, 0.5
    %v705 = vadd.f32 %v667, 0.5
    %v706 = vadd.f32 %v668, 0.5
    %v707 = vadd.f32 %v669, 0.5
    %v708 = vadd.f32 %v670, 0.5
    %v709 = vadd.f32 %v671, 0.5
    %v710 = vadd.f32 %v672, 0.5
    %v711 = vadd.f32 %v673, 0.5
    %v712 = vadd.f32 %v674, 0.5
    %v713 = vadd.f32 %v675, 0.5
    %v714 = vadd.f32 %v676, 0.5
    %v715 = vadd.f32 %v677, 0.5
    %v716 = vadd.f32 %v678, 0.5
    %v717 = vadd.f32 %v679, 0.5
    %v718 = vadd.f32 %v680, 0.5
    %v719 = vadd.f32 %v681, 0.5
    %v720 = vadd.f32 %v682, 0.5
    %v721 = vadd.f32 %v683, 0.5
    %v722 = vadd.f32 %v684, 0.5
    %v723 = vadd.f32 %v685, 0.5
    %v724 = vadd.f32 %v686, 0.5
    %v725 = vadd.f32 %v687, 0.5
    %v726 = vadd.f32 %v688, 0.5
    %v727 = vadd.f32 %v689, 0.5
    %v728 = vadd.f32 %v690, 0.5
    %v729 = vadd.f32 %v691, 0.5
    %v730 = vadd.f32 %v692, 0.5
    %v731 = vadd.f32 %v693, 0.5
    %v732 = vadd.f32 %v694, 0.5
    %v733 = vadd.f32 %v695, 0.5
    %v734 = vadd.f32 %v696, 0.5
    %v735 = vadd.f32 %v697, 0.5
    %v736 = vadd.f32 %v698, 0.5
    %v737 = vadd.f32 %v699, 0.5
    %v738 = vadd.f32 %v700, 0.5
    %v739 = vadd.f32 %v701, 0.5
    %v740 = vadd.f32 %v702, 0.5
    %v741 = vadd.f32 %v703, 0.5
    %v742 = vadd.f32 %v704, 0.5
    %v743 = vmul.f32 %v591, %v705
    %v744 = vmul.f32 %v592, %v706
    %v745 = vmul.f32 %v593, %v707
    %v746 = vmul.f32 %v594, %v708
    %v747 = vmul.f32 %v595, %v709
    %v748 = vmul.f32 %v596, %v710
    %v749 = vmul.f32 %v597, %v711
    %v750 = vmul.f32 %v598, %v712
    %v751 = vmul.f32 %v599, %v713
    %v752 = vmul.f32 %v600, %v714
    %v753 = vmul.f32 %v601, %v715
    %v754 = vmul.f32 %v602, %v716
    %v755 = vmul.f32 %v603, %v717
    %v756 = vmul.f32 %v604, %v718
    %v757 = vmul.f32 %v605, %v719
    %v758 = vmul.f32 %v606, %v720
    %v759 = vmul.f32 %v607, %v721
    %v760 = vmul.f32 %v608, %v722
    %v761 = vmul.f32 %v609, %v723
    %v762 = vmul.f32 %v610, %v724
    %v763 = vmul.f32 %v611, %v725
    %v764 = vmul.f32 %v612, %v726
    %v765 = vmul.f32 %v613, %v727
    %v766 = vmul.f32 %v614, %v728
    %v767 = vmul.f32 %v615, %v729
    %v768 = vmul.f32 %v616, %v730
    %v769 = vmul.f32 %v617, %v731
    %v770 = vmul.f32 %v618, %v732
    %v771 = vmul.f32 %v619, %v733
    %v772 = vmul.f32 %v620, %v734
    %v773 = vmul.f32 %v621, %v735
    %v774 = vmul.f32 %v622, %v736
    %v775 = vmul.f32 %v623, %v737
    %v776 = vmul.f32 %v624, %v738
    %v777 = vmul.f32 %v625, %v739
    %v778 = vmul.f32 %v626, %v740
    %v779 = vmul.f32 %v627, %v741
    %v780 = vmul.f32 %v628, %v742
    %v781 = vld [vmem:[%s3] sm:$0x1]
    %v782 = vld [vmem:[#allocation2] sm:$0x1]
    %v784 = vlaneseq
    %v785 = vshrl.u32 %v784, 7
    %v786 = vsub.s32 0, %v785
    %v787 = vrot.slane %v781, %v786
    %v789 = vmul.f32 %v743, %v787
    %v790 = vmul.f32 %v744, %v787
    %v791 = vmul.f32 %v745, %v787
    %v792 = vmul.f32 %v746, %v787
    %v793 = vmul.f32 %v747, %v787
    %v794 = vmul.f32 %v748, %v787
    %v795 = vmul.f32 %v749, %v787
    %v796 = vmul.f32 %v750, %v787
    %v797 = vmul.f32 %v751, %v787
    %v798 = vmul.f32 %v752, %v787
    %v799 = vmul.f32 %v753, %v787
    %v800 = vmul.f32 %v754, %v787
    %v801 = vmul.f32 %v755, %v787
    %v802 = vmul.f32 %v756, %v787
    %v803 = vmul.f32 %v757, %v787
    %v804 = vmul.f32 %v758, %v787
    %v805 = vmul.f32 %v759, %v787
    %v806 = vmul.f32 %v760, %v787
    %v807 = vmul.f32 %v761, %v787
    %v808 = vmul.f32 %v762, %v787
    %v809 = vmul.f32 %v763, %v787
    %v810 = vmul.f32 %v764, %v787
    %v811 = vmul.f32 %v765, %v787
    %v812 = vmul.f32 %v766, %v787
    %v813 = vmul.f32 %v767, %v787
    %v814 = vmul.f32 %v768, %v787
    %v815 = vmul.f32 %v769, %v787
    %v816 = vmul.f32 %v770, %v787
    %v817 = vmul.f32 %v771, %v787
    %v818 = vmul.f32 %v772, %v787
    %v819 = vmul.f32 %v773, %v787
    %v820 = vmul.f32 %v774, %v787
    %v821 = vmul.f32 %v775, %v787
    %v822 = vmul.f32 %v776, %v787
    %v823 = vmul.f32 %v777, %v787
    %v824 = vmul.f32 %v778, %v787
    %v825 = vmul.f32 %v779, %v787
    %v826 = vmul.f32 %v780, %v787
    %827 = vadd.xlane.f32.xlu0 %v789
    %v828 = vpop.xlane.xlu0 %827
    %829 = vadd.xlane.f32.xlu0 %v790
    %v830 = vpop.xlane.xlu0 %829
    %831 = vadd.xlane.f32.xlu0 %v791
    %v832 = vpop.xlane.xlu0 %831
    %833 = vadd.xlane.f32.xlu0 %v792
    %v834 = vpop.xlane.xlu0 %833
    %835 = vadd.xlane.f32.xlu0 %v793
    %v836 = vpop.xlane.xlu0 %835
    %837 = vadd.xlane.f32.xlu0 %v794
    %v838 = vpop.xlane.xlu0 %837
    %839 = vadd.xlane.f32.xlu0 %v795
    %v840 = vpop.xlane.xlu0 %839
    %841 = vadd.xlane.f32.xlu0 %v796
    %v842 = vpop.xlane.xlu0 %841
    %843 = vadd.xlane.f32.xlu0 %v797
    %v844 = vpop.xlane.xlu0 %843
    %845 = vadd.xlane.f32.xlu0 %v798
    %v846 = vpop.xlane.xlu0 %845
    %847 = vadd.xlane.f32.xlu0 %v799
    %v848 = vpop.xlane.xlu0 %847
    %849 = vadd.xlane.f32.xlu0 %v800
    %v850 = vpop.xlane.xlu0 %849
    %851 = vadd.xlane.f32.xlu0 %v801
    %v852 = vpop.xlane.xlu0 %851
    %853 = vadd.xlane.f32.xlu0 %v802
    %v854 = vpop.xlane.xlu0 %853
    %855 = vadd.xlane.f32.xlu0 %v803
    %v856 = vpop.xlane.xlu0 %855
    %857 = vadd.xlane.f32.xlu0 %v804
    %v858 = vpop.xlane.xlu0 %857
    %859 = vadd.xlane.f32.xlu0 %v805
    %v860 = vpop.xlane.xlu0 %859
    %861 = vadd.xlane.f32.xlu0 %v806
    %v862 = vpop.xlane.xlu0 %861
    %863 = vadd.xlane.f32.xlu0 %v807
    %v864 = vpop.xlane.xlu0 %863
    %865 = vadd.xlane.f32.xlu0 %v808
    %v866 = vpop.xlane.xlu0 %865
    %867 = vadd.xlane.f32.xlu0 %v809
    %v868 = vpop.xlane.xlu0 %867
    %869 = vadd.xlane.f32.xlu0 %v810
    %v870 = vpop.xlane.xlu0 %869
    %871 = vadd.xlane.f32.xlu0 %v811
    %v872 = vpop.xlane.xlu0 %871
    %873 = vadd.xlane.f32.xlu0 %v812
    %v874 = vpop.xlane.xlu0 %873
    %875 = vadd.xlane.f32.xlu0 %v813
    %v876 = vpop.xlane.xlu0 %875
    %877 = vadd.xlane.f32.xlu0 %v814
    %v878 = vpop.xlane.xlu0 %877
    %879 = vadd.xlane.f32.xlu0 %v815
    %v880 = vpop.xlane.xlu0 %879
    %881 = vadd.xlane.f32.xlu0 %v816
    %v882 = vpop.xlane.xlu0 %881
    %883 = vadd.xlane.f32.xlu0 %v817
    %v884 = vpop.xlane.xlu0 %883
    %885 = vadd.xlane.f32.xlu0 %v818
    %v886 = vpop.xlane.xlu0 %885
    %887 = vadd.xlane.f32.xlu0 %v819
    %v888 = vpop.xlane.xlu0 %887
    %889 = vadd.xlane.f32.xlu0 %v820
    %v890 = vpop.xlane.xlu0 %889
    %891 = vadd.xlane.f32.xlu0 %v821
    %v892 = vpop.xlane.xlu0 %891
    %893 = vadd.xlane.f32.xlu0 %v822
    %v894 = vpop.xlane.xlu0 %893
    %895 = vadd.xlane.f32.xlu0 %v823
    %v896 = vpop.xlane.xlu0 %895
    %897 = vadd.xlane.f32.xlu0 %v824
    %v898 = vpop.xlane.xlu0 %897
    %899 = vadd.xlane.f32.xlu0 %v825
    %v900 = vpop.xlane.xlu0 %899
    %901 = vadd.xlane.f32.xlu0 %v826
    %v902 = vpop.xlane.xlu0 %901
    %v904 = vlaneseq
    %v905 = vshrl.u32 %v904, 7
    %v906 = vsub.s32 0, %v905
    %v907 = vrot.slane %v782, %v906
    %v909 = vadd.f32 %v828, %v907
    %v910 = vadd.f32 %v830, %v907
    %v911 = vadd.f32 %v832, %v907
    %v912 = vadd.f32 %v834, %v907
    %v913 = vadd.f32 %v836, %v907
    %v914 = vadd.f32 %v838, %v907
    %v915 = vadd.f32 %v840, %v907
    %v916 = vadd.f32 %v842, %v907
    %v917 = vadd.f32 %v844, %v907
    %v918 = vadd.f32 %v846, %v907
    %v919 = vadd.f32 %v848, %v907
    %v920 = vadd.f32 %v850, %v907
    %v921 = vadd.f32 %v852, %v907
    %v922 = vadd.f32 %v854, %v907
    %v923 = vadd.f32 %v856, %v907
    %v924 = vadd.f32 %v858, %v907
    %v925 = vadd.f32 %v860, %v907
    %v926 = vadd.f32 %v862, %v907
    %v927 = vadd.f32 %v864, %v907
    %v928 = vadd.f32 %v866, %v907
    %v929 = vadd.f32 %v868, %v907
    %v930 = vadd.f32 %v870, %v907
    %v931 = vadd.f32 %v872, %v907
    %v932 = vadd.f32 %v874, %v907
    %v933 = vadd.f32 %v876, %v907
    %v934 = vadd.f32 %v878, %v907
    %v935 = vadd.f32 %v880, %v907
    %v936 = vadd.f32 %v882, %v907
    %v937 = vadd.f32 %v884, %v907
    %v938 = vadd.f32 %v886, %v907
    %v939 = vadd.f32 %v888, %v907
    %v940 = vadd.f32 %v890, %v907
    %v941 = vadd.f32 %v892, %v907
    %v942 = vadd.f32 %v894, %v907
    %v943 = vadd.f32 %v896, %v907
    %v944 = vadd.f32 %v898, %v907
    %v945 = vadd.f32 %v900, %v907
    %v946 = vadd.f32 %v902, %v907
    %vm947 = vcmask 7168
    %948 = vst.msk [vmem:[%s5] sm:$0xff] %vm947, %v909
    %949 = vst.msk [vmem:[%s5 + $0x8] sm:$0xff] %vm947, %v910
    %950 = vst.msk [vmem:[%s5 + $0x10] sm:$0xff] %vm947, %v911
    %951 = vst.msk [vmem:[%s5 + $0x18] sm:$0xff] %vm947, %v912
    %952 = vst.msk [vmem:[%s5 + $0x20] sm:$0xff] %vm947, %v913
    %953 = vst.msk [vmem:[%s5 + $0x28] sm:$0xff] %vm947, %v914
    %954 = vst.msk [vmem:[%s5 + $0x30] sm:$0xff] %vm947, %v915
    %955 = vst.msk [vmem:[%s5 + $0x38] sm:$0xff] %vm947, %v916
    %956 = vst.msk [vmem:[%s5 + $0x40] sm:$0xff] %vm947, %v917
    %957 = vst.msk [vmem:[%s5 + $0x48] sm:$0xff] %vm947, %v918
    %958 = vst.msk [vmem:[%s5 + $0x50] sm:$0xff] %vm947, %v919
    %959 = vst.msk [vmem:[%s5 + $0x58] sm:$0xff] %vm947, %v920
    %960 = vst.msk [vmem:[%s5 + $0x60] sm:$0xff] %vm947, %v921
    %961 = vst.msk [vmem:[%s5 + $0x68] sm:$0xff] %vm947, %v922
    %962 = vst.msk [vmem:[%s5 + $0x70] sm:$0xff] %vm947, %v923
    %963 = vst.msk [vmem:[%s5 + $0x78] sm:$0xff] %vm947, %v924
    %964 = vst.msk [vmem:[%s5 + $0x80] sm:$0xff] %vm947, %v925
    %965 = vst.msk [vmem:[%s5 + $0x88] sm:$0xff] %vm947, %v926
    %966 = vst.msk [vmem:[%s5 + $0x90] sm:$0xff] %vm947, %v927
    %967 = vst.msk [vmem:[%s5 + $0x98] sm:$0xff] %vm947, %v928
    %968 = vst.msk [vmem:[%s5 + $0xa0] sm:$0xff] %vm947, %v929
    %969 = vst.msk [vmem:[%s5 + $0xa8] sm:$0xff] %vm947, %v930
    %970 = vst.msk [vmem:[%s5 + $0xb0] sm:$0xff] %vm947, %v931
    %971 = vst.msk [vmem:[%s5 + $0xb8] sm:$0xff] %vm947, %v932
    %972 = vst.msk [vmem:[%s5 + $0xc0] sm:$0xff] %vm947, %v933
    %973 = vst.msk [vmem:[%s5 + $0xc8] sm:$0xff] %vm947, %v934
    %974 = vst.msk [vmem:[%s5 + $0xd0] sm:$0xff] %vm947, %v935
    %975 = vst.msk [vmem:[%s5 + $0xd8] sm:$0xff] %vm947, %v936
    %976 = vst.msk [vmem:[%s5 + $0xe0] sm:$0xff] %vm947, %v937
    %977 = vst.msk [vmem:[%s5 + $0xe8] sm:$0xff] %vm947, %v938
    %978 = vst.msk [vmem:[%s5 + $0xf0] sm:$0xff] %vm947, %v939
    %979 = vst.msk [vmem:[%s5 + $0xf8] sm:$0xff] %vm947, %v940
    %980 = vst.msk [vmem:[%s5 + $0x100] sm:$0xff] %vm947, %v941
    %981 = vst.msk [vmem:[%s5 + $0x108] sm:$0xff] %vm947, %v942
    %982 = vst.msk [vmem:[%s5 + $0x110] sm:$0xff] %vm947, %v943
    %983 = vst.msk [vmem:[%s5 + $0x118] sm:$0xff] %vm947, %v944
    %984 = vst.msk [vmem:[%s5 + $0x120] sm:$0xff] %vm947, %v945
    %985 = vst.msk [vmem:[%s5 + $0x128] sm:$0xff] %vm947, %v946
    // Predicated region
    $region30: #{gated_attention_forward.1} parent=1 // pred_check
      _
    $region31: #{gated_attention_forward.1} parent=1 // pred_check_branch
      %987 = sbr.rel (0) target = $region33
    $region32: #{gated_attention_forward.1} parent=1 // pred_region
      _
    $region33: #{gated_attention_forward.1} parent=1 // pred_fallthru
      _
    // Predicated region
    $region34: #{gated_attention_forward.1} parent=1 // pred_check
      _
    $region35: #{gated_attention_forward.1} parent=1 // pred_check_branch
      %989 = sbr.rel (0) target = $region37
    $region36: #{gated_attention_forward.1} parent=1 // pred_region
      _
    $region37: #{gated_attention_forward.1} parent=1 // pred_fallthru
      _
    %990 = vsyncpa [#allocation4], 1
    %991 = vsyncpa [#allocation6], 1

</llo_original>
